<compile_context>
chip_gen: v5e
topology: v5e:2x2
jax: 0.10.0
libtpu: 0.0.40
codegen_flags: <defaults>
</compile_context>

<pallas_src>
import jax
import jax.numpy as jnp
from jax.experimental import pallas as pl
from jax.experimental.pallas import tpu as pltpu


def time_feature_embedding_kernel(x_ref, w_ref, b_ref, o_ref):
    # x_ref: (tm, d_inp)      f32 VMEM
    # w_ref: (d_inp, d_model) f32 VMEM
    # b_ref: (1, d_model)     f32 VMEM
    # o_ref: (tm, d_model)    f32 VMEM (lane-dense: d_model multiple of 128)
    o_ref[...] = (
        jnp.dot(x_ref[...], w_ref[...], preferred_element_type=jnp.float32)
        + b_ref[...]
    )


def time_feature_embedding(x, w, b, *, row_tile=256):
    """y = x @ w + b applied per timestep.

    x: (B, T, d_inp) f32 time features
    w: (d_inp, d_model) f32   (transposed PyTorch nn.Linear weight)
    b: (d_model,) f32
    returns (B, T, d_model) f32
    """
    B, T, d_inp = x.shape
    d_inp_w, d_model = w.shape
    assert d_inp_w == d_inp

    M = B * T
    x2 = x.reshape(M, d_inp)

    # Pick the row tile: whole (sublane-padded) problem if small, else fixed tile.
    m_pad = pl.cdiv(M, 8) * 8
    if m_pad <= row_tile:
        tm = m_pad
    else:
        tm = row_tile
        m_pad = pl.cdiv(M, tm) * tm
    if m_pad != M:
        x2 = jnp.pad(x2, ((0, m_pad - M), (0, 0)))

    b2 = b.reshape(1, d_model)

    out = pl.pallas_call(
        time_feature_embedding_kernel,
        out_shape=jax.ShapeDtypeStruct((m_pad, d_model), jnp.float32),
        grid=(m_pad // tm,),
        in_specs=[
            pl.BlockSpec((tm, d_inp), lambda i: (i, 0)),
            pl.BlockSpec((d_inp, d_model), lambda i: (0, 0)),
            pl.BlockSpec((1, d_model), lambda i: (0, 0)),
        ],
        out_specs=pl.BlockSpec((tm, d_model), lambda i: (i, 0)),
        compiler_params=pltpu.CompilerParams(
            dimension_semantics=("parallel",),
        ),
    )(x2, w, b2)

    return out[:M].reshape(B, T, d_model)


if __name__ == "__main__":
    # freq='h' -> d_inp = 4 time features; small batch/seq; d_model = 128 so the
    # output is lane-dense (full 128-lane stores, no masked vst).
    B, T, d_inp, d_model = 2, 8, 4, 128

    key = jax.random.PRNGKey(0)
    k_w, k_b, k_x = jax.random.split(key, 3)

    # nn.Linear init: U(-1/sqrt(d_inp), 1/sqrt(d_inp)) for weight and bias.
    bound = 1.0 / (d_inp ** 0.5)
    w_pt = jax.random.uniform(k_w, (d_model, d_inp), jnp.float32, -bound, bound)
    b = jax.random.uniform(k_b, (d_model,), jnp.float32, -bound, bound)
    w = w_pt.T  # (d_inp, d_model) — layout used by the kernel

    # Continuous time-feature inputs (e.g. encoded hour/day-of-week/...).
    x = jax.random.uniform(k_x, (B, T, d_inp), jnp.float32, -0.5, 0.5)

    out = time_feature_embedding(x, w, b)
    out = jax.block_until_ready(out)

    # Pure-JAX reference: Linear applied per timestep.
    ref = jnp.einsum("btk,km->btm", x, w) + b[None, None, :]

    assert out.shape == (B, T, d_model)
    assert jnp.allclose(out, ref, atol=1e-5, rtol=1e-5)

    print("KERNEL_OK")
</pallas_src>

<mosaic_0001>
module attributes {stable_mosaic.version = 11 : i64} {
  func.func @time_feature_embedding_kernel(%arg0: i32, %arg1: memref<16x4xf32, #tpu.memory_space<vmem>>, %arg2: memref<4x128xf32, #tpu.memory_space<vmem>>, %arg3: memref<1x128xf32, #tpu.memory_space<vmem>>, %arg4: memref<16x128xf32, #tpu.memory_space<vmem>>) attributes {dimension_semantics = [#tpu.dimension_semantics<parallel>], iteration_bounds = array<i64: 1>, scalar_prefetch = 0 : i64, scratch_operands = 0 : i64, tpu.core_type = #tpu.core_type<tc>, window_params = [{transform_indices = @transform_0, window_bounds = array<i64: 16, 4>}, {pipeline_mode = #tpu.pipeline_mode<synchronous>, transform_indices = @transform_1, window_bounds = array<i64: 4, 128>}, {pipeline_mode = #tpu.pipeline_mode<synchronous>, transform_indices = @transform_2, window_bounds = array<i64: 1, 128>}, {transform_indices = @transform_3, window_bounds = array<i64: 16, 128>}]} {
    %c0 = arith.constant 0 : index
    %c0_0 = arith.constant 0 : index
    %0 = vector.load %arg1[%c0, %c0_0] : memref<16x4xf32, #tpu.memory_space<vmem>>, vector<16x4xf32>
    %c0_1 = arith.constant 0 : index
    %c0_2 = arith.constant 0 : index
    %1 = vector.load %arg2[%c0_1, %c0_2] : memref<4x128xf32, #tpu.memory_space<vmem>>, vector<4x128xf32>
    %cst = arith.constant dense<0.000000e+00> : vector<16x128xf32>
    %2 = tpu.matmul %0, %1, %cst {dimension_numbers = #tpu.dot_dimension_numbers<[1], [0], [0], [1], [0, 0, 1, 1], [], []>} : vector<16x4xf32>, vector<4x128xf32>, vector<16x128xf32> -> vector<16x128xf32>
    %c0_3 = arith.constant 0 : index
    %c0_4 = arith.constant 0 : index
    %3 = vector.load %arg3[%c0_3, %c0_4] : memref<1x128xf32, #tpu.memory_space<vmem>>, vector<1x128xf32>
    %4 = vector.broadcast %3 : vector<1x128xf32> to vector<16x128xf32>
    %5 = arith.addf %2, %4 : vector<16x128xf32>
    %c0_5 = arith.constant 0 : index
    %c0_6 = arith.constant 0 : index
    %6 = vector.load %arg4[%c0_5, %c0_6] : memref<16x128xf32, #tpu.memory_space<vmem>>, vector<16x128xf32>
    tpu.vector_store %arg4[%c0_5, %c0_6], %5 {strides = array<i32>} : memref<16x128xf32, #tpu.memory_space<vmem>>, vector<16x128xf32>,
    return
  }
  func.func @transform_0(%arg0: i32) -> (i32, i32) {
    %c0_i32 = arith.constant 0 : i32
    %c0_i32_0 = arith.constant 0 : i32
    return %arg0, %c0_i32 : i32, i32
  }
  func.func @transform_1(%arg0: i32) -> (i32, i32) {
    %c0_i32 = arith.constant 0 : i32
    %c0_i32_0 = arith.constant 0 : i32
    %c0_i32_1 = arith.constant 0 : i32
    return %c0_i32, %c0_i32_0 : i32, i32
  }
  func.func @transform_2(%arg0: i32) -> (i32, i32) {
    %c0_i32 = arith.constant 0 : i32
    %c0_i32_0 = arith.constant 0 : i32
    %c0_i32_1 = arith.constant 0 : i32
    return %c0_i32, %c0_i32_0 : i32, i32
  }
  func.func @transform_3(%arg0: i32) -> (i32, i32) {
    %c0_i32 = arith.constant 0 : i32
    %c0_i32_0 = arith.constant 0 : i32
    return %arg0, %c0_i32 : i32, i32
  }
}

</mosaic_0001>

<llo_original>
// kernel: tpu_custom_call.1
$region0: #{tpu_custom_call.1}
  #allocation0 [shape = 'u32[]', space=smem, size = 0x4, offset = 0x4, fixed_abs, tag = 'smem constant byte address 0x4 - core index']
  #allocation1 [shape = 'u32[72,128]{1,0:T(1,128)}', space=vmem, size = 0x9000, scoped, tag = 'internal scratch']
  %s0 = inlined_call_operand.vmem [shape: f32[16,4], index: 0, kind: input, shape index: {}]
  %s1 = inlined_call_operand.vmem [shape: f32[4,128], index: 1, kind: input, shape index: {}]
  %s2 = inlined_call_operand.vmem [shape: f32[1,128], index: 2, kind: input, shape index: {}]
  %s3 = inlined_call_operand.hbm [shape: f32[16,128], index: 3, kind: output, shape index: {}]
  %s4 = sld [smem:[#allocation0]]
  $region22: #{tpu_custom_call.1} parent=0
    _
  %s6 = ssub.s32 1, %s4
  %s7 = scalar_select 0, %s6, %s4
  $region1: #{tpu_custom_call.1} parent=0
    #allocation2 [shape = 'u8[8192]{0}', space=vmem, size = 0x2000, scoped, tag = 'output window, operand 0, single buffered']
    #allocation3 [shape = 's32[1]{0}', space=sflag, size = 0x4, scoped, tag = 'scoped memory for tpu_custom_call.1']
    %8 = vsyncpa [#allocation3], 0
    // Predicated region
    $region2: #{tpu_custom_call.1} parent=1 // pred_check
      _
    $region3: #{tpu_custom_call.1} parent=1 // pred_check_branch
      %10 = sbr.rel (0) target = $region5
    $region4: #{tpu_custom_call.1} parent=1 // pred_region
      _
    $region5: #{tpu_custom_call.1} parent=1 // pred_fallthru
      _
    // Predicated region
    $region6: #{tpu_custom_call.1} parent=1 // pred_check
      _
    $region7: #{tpu_custom_call.1} parent=1 // pred_check_branch
      %12 = sbr.rel (0) target = $region9
    $region8: #{tpu_custom_call.1} parent=1 // pred_region
      _
    $region9: #{tpu_custom_call.1} parent=1 // pred_fallthru
      _
    // Predicated region
    $region10: #{tpu_custom_call.1} parent=1 // pred_check
      _
    $region11: #{tpu_custom_call.1} parent=1 // pred_check_branch
      %14 = sbr.rel (0) target = $region13
    $region12: #{tpu_custom_call.1} parent=1 // pred_region
      _
    $region13: #{tpu_custom_call.1} parent=1 // pred_fallthru
      _
    %v15 = vld [vmem:[%s0] sm:$0xff]
    %v16 = vld [vmem:[%s0 + $0x8] sm:$0xff]
    %v17 = vld [vmem:[%s1] sm:$0xf]
    %v18 = vld [vmem:[%s2] sm:$0x1]
    %v20 = vperm.slane %v18, 0
    %vm22 = vcmask 31744
    %v24 = vsel %vm22, %v15, 0
    %v27 = vsel %vm22, %v16, 0
    %vm29 = vcmask 1043456
    %v31 = vsel %vm29, %v17, 0
    %33 = vmatpush.msra.mxu0 0.0
    %34 = vmatpush.msra.mxu0 0.0
    %35 = vmatpush.msra.mxu0 0.0
    %36 = vmatpush.msra.mxu0 0.0
    %37 = vmatpush.msra.mxu0 0.0
    %38 = vmatpush.msra.mxu0 0.0
    %39 = vmatpush.msra.mxu0 0.0
    %40 = vmatpush.msra.mxu0 0.0
    %41 = vmatpush.msra.mxu0 0.0
    %42 = vmatpush.msra.mxu0 0.0
    %43 = vmatpush.msra.mxu0 0.0
    %44 = vmatpush.msra.mxu0 0.0
    %45 = vmatpush.msra.mxu0 0.0
    %46 = vmatpush.msra.mxu0 0.0
    %47 = vmatpush.msra.mxu0 0.0
    %48 = vmatpush.msra.mxu0 %v31
    %49 = vmatmul.f32.gmra.mxu0 %v24
    %v50 = vpop.f32.mrf.mxu0
    %v51 = vadd.f32 %v20, %v50
    %52 = vmatmul.f32.gmra.mxu0 %v27
    %v53 = vpop.f32.mrf.mxu0
    %v54 = vadd.f32 %v20, %v53
    %55 = vdwg.mxu0
    %56 = vst [vmem:[#allocation2] sm:$0xff] %v51
    %57 = vst [vmem:[#allocation2 + $0x8] sm:$0xff] %v54
    // Predicated region
    $region14: #{tpu_custom_call.1} parent=1 // pred_check
      _
    $region15: #{tpu_custom_call.1} parent=1 // pred_check_branch
      %59 = sbr.rel (0) target = $region17
    $region16: #{tpu_custom_call.1} parent=1 // pred_region
      %61 = vsyncadd [#allocation3], 0
      %s62 = sshll.u32 [#allocation2], 4
      %s63 = int_to_ptr.vmem [resolvable:$true] %s62
      %s64 = sshll.u32 %s3, 4
      %s65 = int_to_ptr.hbm [resolvable:$true] %s64
      %70 = dma.vmem_to_hbm [thread:$0]  %s63, 256, %s65, [#allocation3], 128, 128, 8
    $region17: #{tpu_custom_call.1} parent=1 // pred_fallthru
      _
    // Predicated region
    $region18: #{tpu_custom_call.1} parent=1 // pred_check
      _
    $region19: #{tpu_custom_call.1} parent=1 // pred_check_branch
      %72 = sbr.rel (0) target = $region21
    $region20: #{tpu_custom_call.1} parent=1 // pred_region
      %74 = dma.done [#allocation3], 256
    $region21: #{tpu_custom_call.1} parent=1 // pred_fallthru
      _
    %75 = vsyncpa [#allocation3], 1

</llo_original>
